<compile_context>
chip_gen: v6e
topology: v6e:2x2x1
jax: 0.10.0
libtpu: 0.0.40
codegen_flags: <defaults>
</compile_context>

<pallas_src>
import functools

import jax
import jax.numpy as jnp
from jax.experimental import pallas as pl
from jax.experimental.pallas import tpu as pltpu


# ----------------------------------------------------------------------------
# Hardware-aware tuning knobs
# ----------------------------------------------------------------------------
def _detect_hw():
    tm, vmem, two_core = 256, None, False
    try:
        dev = jax.devices()[0]
        if dev.platform == "tpu":
            kind = dev.device_kind.lower()
            if "v5 lite" in kind or "v5e" in kind or "v5lite" in kind:
                tm, vmem = 256, 28 * 1024 * 1024
            elif "v6" in kind:
                tm, vmem = 512, 48 * 1024 * 1024
            elif "v7" in kind:
                tm, vmem, two_core = 512, 40 * 1024 * 1024, True
            else:
                tm, vmem = 256, 32 * 1024 * 1024
    except Exception:
        pass
    return {"tm": tm, "vmem": vmem, "two_core": two_core}


_HW = _detect_hw()


def _pick_tm(M):
    tm = _HW["tm"]
    if _HW["two_core"]:
        # keep >= 2 M blocks so both v7x TensorCores get work
        while tm > 256 and pl.cdiv(M, tm) < 2:
            tm //= 2
    return tm


def _apply_act(y, act):
    if act == "relu":
        return jnp.maximum(y, 0.0)
    if act == "lrelu":
        return jnp.where(y >= 0.0, y, 0.2 * y)
    return y


# ----------------------------------------------------------------------------
# Pallas GEMM kernel: (M,K) x (K,N) + bias, fused activation, f32 accumulation
# ----------------------------------------------------------------------------
def _gemm_kernel(a_ref, b_ref, bias_ref, o_ref, *, act):
    y = jnp.dot(a_ref[...], b_ref[...], preferred_element_type=jnp.float32)
    y = y + bias_ref[...]                      # (1, N) broadcasts over rows
    y = _apply_act(y, act)
    o_ref[...] = y.astype(o_ref.dtype)


@functools.lru_cache(maxsize=None)
def _get_gemm_fn(M, K, N, tm, act, out_dtype_name):
    # TODO(synk): weight / bias blocks never change across the M grid; add
    #             pipeline_mode=pl.Buffered(1) once single-buffering is
    #             portable across the JAX versions we target.
    return pl.pallas_call(
        functools.partial(_gemm_kernel, act=act),
        out_shape=jax.ShapeDtypeStruct((M, N), jnp.dtype(out_dtype_name)),
        grid_spec=pltpu.PrefetchScalarGridSpec(
            num_scalar_prefetch=0,
            grid=(pl.cdiv(M, tm),),                       # only M is tiled
            in_specs=[pl.BlockSpec((tm, K), lambda i: (i, 0)),
                      pl.BlockSpec((K, N), lambda i: (0, 0)),
                      pl.BlockSpec((1, N), lambda i: (0, 0))],
            out_specs=pl.BlockSpec((tm, N), lambda i: (i, 0))),
        compiler_params=pltpu.CompilerParams(
            dimension_semantics=("parallel",),
            vmem_limit_bytes=_HW["vmem"]),
    )


def matmul_bias_act(a, w, bias, act=None, out_dtype=None):
    """(M,K) x (K,N) + bias with fused activation.

    Large, lane-aligned GEMMs run on the MXU via the Pallas kernel (bf16
    operands, f32 accumulation, no padding / slicing of the activations).
    Small or unaligned GEMMs go straight to XLA.
    """
    M, K = a.shape
    N = w.shape[1]
    out_dtype = a.dtype if out_dtype is None else out_dtype
    a16 = a.astype(jnp.bfloat16)
    w16 = w.astype(jnp.bfloat16)
    b32 = bias.astype(jnp.float32)

    use_pallas = (M >= 256) and (K >= 128) and (N >= 128) and (N % 128 == 0)
    if not use_pallas:
        y = jnp.dot(a16, w16, preferred_element_type=jnp.float32) + b32[None, :]
        return _apply_act(y, act).astype(out_dtype)

    tm = _pick_tm(M)
    fn = _get_gemm_fn(M, K, N, tm, act, jnp.dtype(out_dtype).name)
    return fn(a16, w16, b32.reshape(1, N))


# ----------------------------------------------------------------------------
# Pallas direct 3x3 conv kernel (NHWC, stride 1, pad 1):
#   9 shifted GEMMs accumulated in a VMEM f32 accumulator, bias+act fused.
# ----------------------------------------------------------------------------
def _conv3x3_kernel(x_ref, w_ref, b_ref, o_ref, *, H, W, act):
    x = x_ref[0]                                   # (H+2, W+2, Cin) bf16
    cout = o_ref.shape[-1]
    acc = jnp.zeros((H * W, cout), jnp.float32)
    for di in range(3):
        for dj in range(3):
            patch = x[di:di + H, dj:dj + W, :].reshape(H * W, -1)
            acc = acc + jnp.dot(patch, w_ref[di * 3 + dj],
                                preferred_element_type=jnp.float32)
    acc = _apply_act(acc + b_ref[...], act)
    o_ref[0] = acc.reshape(H, W, cout).astype(o_ref.dtype)


@functools.lru_cache(maxsize=None)
def _get_conv3_fn(B, H, W, cin, cout, act, out_dtype_name):
    # TODO(synk): for large images, tile over row strips with an explicit
    #             halo DMA instead of one whole image per grid step.
    return pl.pallas_call(
        functools.partial(_conv3x3_kernel, H=H, W=W, act=act),
        out_shape=jax.ShapeDtypeStruct((B, H, W, cout), jnp.dtype(out_dtype_name)),
        grid_spec=pltpu.PrefetchScalarGridSpec(
            num_scalar_prefetch=0,
            grid=(B,),
            in_specs=[pl.BlockSpec((1, H + 2, W + 2, cin), lambda b: (b, 0, 0, 0)),
                      pl.BlockSpec((9, cin, cout), lambda b: (0, 0, 0)),
                      pl.BlockSpec((1, cout), lambda b: (0, 0))],
            out_specs=pl.BlockSpec((1, H, W, cout), lambda b: (b, 0, 0, 0))),
        compiler_params=pltpu.CompilerParams(
            dimension_semantics=("parallel",),
            vmem_limit_bytes=_HW["vmem"]),
    )


def _conv3x3_xla(x, w, b, act, out_dtype):
    cin, cout = w.shape[1], w.shape[2]
    kh = w.reshape(3, 3, cin, cout).astype(jnp.bfloat16)
    y = jax.lax.conv_general_dilated(
        x.astype(jnp.bfloat16), kh, window_strides=(1, 1),
        padding=((1, 1), (1, 1)),
        dimension_numbers=("NHWC", "HWIO", "NHWC"),
        preferred_element_type=jnp.float32)
    return _apply_act(y + b, act).astype(out_dtype)


def conv2d(p, x, act=None, out_dtype=None):
    """NHWC conv.  1x1 -> GEMM path; 3x3 (pad=1) -> Pallas direct conv."""
    w, b = p["w"], p["b"]                    # (k*k, Cin, Cout) bf16, (Cout,) f32
    kk, cin, cout = w.shape
    out_dtype = x.dtype if out_dtype is None else out_dtype
    B, H, Wd, C = x.shape
    if kk == 1:
        y = matmul_bias_act(x.reshape(B * H * Wd, C), w[0], b, act, out_dtype)
        return y.reshape(B, H, Wd, cout)
    # 3x3, stride 1, pad 1
    bytes_in = (H + 2) * (Wd + 2) * cin * 2
    bytes_out = H * Wd * cout * 2
    footprint = (2 * (bytes_in + bytes_out) + 9 * cin * cout * 2
                 + 2 * H * Wd * (cout * 4 + cin * 2))
    if min(H, Wd) >= 8 and Wd % 8 == 0 and footprint < (8 << 20):
        xp = jnp.pad(x.astype(jnp.bfloat16), ((0, 0), (1, 1), (1, 1), (0, 0)))
        fn = _get_conv3_fn(B, H, Wd, cin, cout, act, jnp.dtype(out_dtype).name)
        return fn(xp, w, b.astype(jnp.float32).reshape(1, cout))
    return _conv3x3_xla(x, w, b, act, out_dtype)


# ----------------------------------------------------------------------------
# Pallas affine-coupling kernel:  y2 = x2 * exp(clamp*(2*sigmoid(h)-1)) + g
# ----------------------------------------------------------------------------
def _coupling_kernel(x_ref, h_ref, g_ref, o_ref, *, clamp):
    h = h_ref[...].astype(jnp.float32)
    s = clamp * (2.0 * jax.nn.sigmoid(h) - 1.0)
    y = x_ref[...].astype(jnp.float32) * jnp.exp(s) + g_ref[...].astype(jnp.float32)
    o_ref[...] = y.astype(o_ref.dtype)


@functools.lru_cache(maxsize=None)
def _get_coupling_fn(R, C, TR, clamp, out_dtype_name):
    return pl.pallas_call(
        functools.partial(_coupling_kernel, clamp=clamp),
        out_shape=jax.ShapeDtypeStruct((R, C), jnp.dtype(out_dtype_name)),
        grid_spec=pltpu.PrefetchScalarGridSpec(
            num_scalar_prefetch=0,
            grid=(pl.cdiv(R, TR),),
            in_specs=[pl.BlockSpec((TR, C), lambda i: (i, 0)) for _ in range(3)],
            out_specs=pl.BlockSpec((TR, C), lambda i: (i, 0))),
        compiler_params=pltpu.CompilerParams(
            dimension_semantics=("parallel",),
            vmem_limit_bytes=_HW["vmem"]),
    )


def affine_coupling(x2, h, g, clamp=0.8):
    shape = x2.shape
    C = shape[-1]
    R = x2.size // C
    if C % 128 != 0 or R < 8:
        # small / lane-unaligned channel dim: let XLA fuse sigmoid/exp/mul/add
        s = clamp * (2.0 * jax.nn.sigmoid(h.astype(jnp.float32)) - 1.0)
        y = x2.astype(jnp.float32) * jnp.exp(s) + g.astype(jnp.float32)
        return y.astype(x2.dtype)
    TR = 256 if R > 512 else R
    fn = _get_coupling_fn(R, C, TR, float(clamp), jnp.dtype(x2.dtype).name)
    out = fn(x2.reshape(R, C), h.reshape(R, C), g.reshape(R, C))
    return out.reshape(shape)


# ----------------------------------------------------------------------------
# Parameter construction (only jnp arrays in the pytree - no structural ints)
# ----------------------------------------------------------------------------
_PARAM_COUNTER = [0]


def _param(shape, scale=0.05, dtype=jnp.float32):
    _PARAM_COUNTER[0] += 1
    key = jax.random.PRNGKey(_PARAM_COUNTER[0])
    return (jax.random.normal(key, shape, dtype=jnp.float32) * scale).astype(dtype)


def init_conv(cin, cout, k):
    return {"w": _param((k * k, cin, cout), dtype=jnp.bfloat16),
            "b": _param((cout,), 0.02)}


def init_bn(c):
    return {"w": jnp.ones((c,), jnp.float32) + _param((c,), 0.01),
            "b": _param((c,), 0.01)}


def _bn_scale_shift(bn, eps=1e-5):
    # TODO(synk): eval-mode BatchNorm with identity running stats (real running
    #             statistics are not available from the spec).
    return bn["w"] / jnp.sqrt(1.0 + eps), bn["b"]


def fold_bn_conv(conv, bn):
    scale, shift = _bn_scale_shift(bn)
    w = (conv["w"].astype(jnp.float32) * scale[None, None, :]).astype(jnp.bfloat16)
    b = conv["b"] * scale + shift
    return {"w": w, "b": b}


def init_ln(c):
    return {"w": jnp.ones((c,), jnp.float32), "b": jnp.zeros((c,), jnp.float32)}


def layer_norm(p, x, eps=1e-5):
    xf = x.astype(jnp.float32)
    mu = xf.mean(-1, keepdims=True)
    var = xf.var(-1, keepdims=True)
    y = (xf - mu) * jax.lax.rsqrt(var + eps) * p["w"] + p["b"]
    return y.astype(x.dtype)


def instance_norm(p, x, eps=1e-5):
    xf = x.astype(jnp.float32)
    mu = xf.mean((1, 2), keepdims=True)
    var = xf.var((1, 2), keepdims=True)
    y = (xf - mu) * jax.lax.rsqrt(var + eps) * p["w"] + p["b"]
    return y.astype(x.dtype)


# ----------------------------------------------------------------------------
# Reconstructed GINN sub-modules (NHWC, bf16 activations)
# ----------------------------------------------------------------------------
# TODO(synk): exact basic_con definition not in the spec; reconstructed as Conv3x3+BN+ReLU.
def init_basic_con(cin, cout):
    return {"conv": fold_bn_conv(init_conv(cin, cout, 3), init_bn(cout))}


def basic_con(p, x):
    return conv2d(p["conv"], x, act="relu")


# TODO(synk): exact ChannelGCN definition not in the spec; reconstructed as a
# channel-graph reasoning block (channel-affinity softmax + graph weight + residual).
def init_channel_gcn(C):
    wg = _param((C, C))
    scale, shift = _bn_scale_shift(init_bn(C))
    return {"wg": (wg * scale[:, None]).astype(jnp.bfloat16), "wg_b": shift}


def channel_gcn(p, x):
    B, H, W, C = x.shape
    N = H * W
    xn = x.reshape(B, N, C)
    aff = jnp.einsum('bnc,bnd->bcd', xn, xn,
                     preferred_element_type=jnp.float32) / jnp.sqrt(jnp.float32(N))
    A = jax.nn.softmax(aff, axis=-1).astype(x.dtype)
    y = jnp.einsum('bcd,bnd->bnc', A, xn, preferred_element_type=jnp.float32)
    y = jnp.einsum('bnc,dc->bnd', y.astype(x.dtype), p["wg"],
                   preferred_element_type=jnp.float32) + p["wg_b"]
    y = y.reshape(B, H, W, C).astype(x.dtype)
    return jax.nn.relu(x + y)


def init_spatial_gcn(C):
    ip = C // 2
    wg = _param((ip, ip))
    scale, shift = _bn_scale_shift(init_bn(ip))
    return {"node_k": init_conv(C, ip, 1),
            "node_q": init_conv(C, ip, 1),
            "node_v": init_conv(C, ip, 1),
            "conv_wg": (wg * scale[:, None]).astype(jnp.bfloat16),
            "conv_wg_b": shift,
            "out_conv": fold_bn_conv(init_conv(ip, C, 1), init_bn(C))}


def spatial_gcn(p, x):
    B, H, W, C = x.shape
    N = H * W
    nk = conv2d(p["node_k"], x).reshape(B, N, -1)
    nq = conv2d(p["node_q"], x).reshape(B, N, -1)
    nv = conv2d(p["node_v"], x).reshape(B, N, -1)
    AV = jnp.einsum('bni,bnj->bij', nq, nv, preferred_element_type=jnp.float32)
    AV = jax.nn.softmax(AV, axis=-1).astype(x.dtype)
    AV = jnp.einsum('bni,bij->bnj', nk, AV, preferred_element_type=jnp.float32)
    AVW = jnp.einsum('bnj,ij->bni', AV.astype(x.dtype), p["conv_wg"],
                     preferred_element_type=jnp.float32) + p["conv_wg_b"]
    AVW = AVW.reshape(B, H, W, -1).astype(x.dtype)
    out = conv2d(p["out_conv"], AVW)
    return jax.nn.relu(out + x)


# subnet('HinResnet') -> HinResBlock (half-instance-norm residual block)
def init_hin(cin, cout):
    return {"identity": init_conv(cin, cout, 1),
            "conv1": init_conv(cin, cout, 3),
            "conv2": init_conv(cout, cout, 3),
            "inorm": {"w": jnp.ones((cout // 2,), jnp.float32),
                      "b": jnp.zeros((cout // 2,), jnp.float32)}}


def hin_block(p, x):
    out = conv2d(p["conv1"], x)
    h = out.shape[-1] // 2
    o1 = instance_norm(p["inorm"], out[..., :h])
    out = jnp.concatenate([o1, out[..., h:]], axis=-1)
    out = jax.nn.leaky_relu(out, 0.2)
    out = conv2d(p["conv2"], out, act="lrelu")
    return out + conv2d(p["identity"], x)


def init_invblock(c1, c2):
    return {"F": init_hin(c2, c1), "G": init_hin(c1, c2), "H": init_hin(c1, c2)}


def inv_block(p, x1, x2, clamp=0.8):
    y1 = x1 + hin_block(p["F"], x2)
    h = hin_block(p["H"], y1)
    g = hin_block(p["G"], y1)
    y2 = affine_coupling(x2, h, g, clamp)
    return jnp.concatenate([y1, y2], axis=-1)


def init_patch_merging(dim):
    return {"norm": init_ln(4 * dim),
            "w": _param((4 * dim, 2 * dim), dtype=jnp.bfloat16),
            "b": jnp.zeros((2 * dim,), jnp.float32)}


def patch_merging(p, x):
    B, H, W, C = x.shape
    x0 = x[:, 0::2, 0::2]
    x1 = x[:, 1::2, 0::2]
    x2 = x[:, 0::2, 1::2]
    x3 = x[:, 1::2, 1::2]
    xc = layer_norm(p["norm"], jnp.concatenate([x0, x1, x2, x3], axis=-1))
    y = matmul_bias_act(xc.reshape(-1, 4 * C), p["w"], p["b"])
    return y.reshape(B, H // 2, W // 2, 2 * C)


def init_patch_expanding(dim, factor=2):
    return {"w": _param((dim, 2 * dim), dtype=jnp.bfloat16),
            "b": jnp.zeros((2 * dim,), jnp.float32),
            "norm": init_ln((2 * dim) // (factor * factor))}


def patch_expanding(p, x, factor=2):
    B, H, W, C = x.shape
    y = matmul_bias_act(x.reshape(-1, C), p["w"], p["b"])
    cout = (2 * C) // (factor * factor)
    y = y.reshape(B, H, W, factor, factor, cout)
    y = y.transpose(0, 1, 3, 2, 4, 5).reshape(B, H * factor, W * factor, cout)
    return layer_norm(p["norm"], y)


# ----------------------------------------------------------------------------
# GINN
# ----------------------------------------------------------------------------
def init_ginn(in_channels, inter_channels, out_channels):
    C = inter_channels
    p = {"base_conv": init_basic_con(in_channels, C)}
    for lvl in (1, 2, 3):
        p[f"cgcn{lvl}"] = init_channel_gcn(C)
        p[f"sgcn{lvl}"] = init_spatial_gcn(C)
        p[f"inn{lvl}"] = init_invblock(C, C)
        p[f"conv{lvl}"] = init_conv(2 * C, C // 2, 3)
        p[f"pm{lvl}"] = init_patch_merging(C // 2)
    p["inn5"] = init_invblock(C // 2, C // 2)
    p["inn7"] = init_invblock(C, C)
    p["pe3"] = init_patch_expanding(2 * C)
    p["inn8"] = init_invblock(C, C)
    p["pe2"] = init_patch_expanding(2 * C)
    p["inn9"] = init_invblock(C, C)
    p["pe1"] = init_patch_expanding(2 * C)
    p["inn10"] = init_invblock(C, C)
    p["seg_head"] = init_conv(2 * C, out_channels, 3)
    return p


def ginn_forward(p, x_nchw):
    if x_nchw.shape[1] == 1:
        x_nchw = jnp.tile(x_nchw, (1, 3, 1, 1))
    # one NCHW -> NHWC transpose at the input, bf16 activations throughout
    x = x_nchw.transpose(0, 2, 3, 1).astype(jnp.bfloat16)
    x = basic_con(p["base_conv"], x)

    cg1 = channel_gcn(p["cgcn1"], x)
    sg1 = spatial_gcn(p["sgcn1"], x)
    inn1 = conv2d(p["conv1"], inv_block(p["inn1"], cg1, sg1))
    x2 = patch_merging(p["pm1"], inn1)

    cg2 = channel_gcn(p["cgcn2"], x2)
    sg2 = spatial_gcn(p["sgcn2"], x2)
    inn2 = conv2d(p["conv2"], inv_block(p["inn2"], cg2, sg2))
    x3 = patch_merging(p["pm2"], inn2)

    cg3 = channel_gcn(p["cgcn3"], x3)
    sg3 = spatial_gcn(p["sgcn3"], x3)
    inn3 = conv2d(p["conv3"], inv_block(p["inn3"], cg3, sg3))
    x4 = patch_merging(p["pm3"], inn3)

    half = x4.shape[-1] // 2
    x6 = inv_block(p["inn5"], x4[..., :half], x4[..., half:])
    x8 = inv_block(p["inn7"], x6, x4)
    x8 = patch_expanding(p["pe3"], x8)
    x9 = inv_block(p["inn8"], x8, x3)
    x9 = patch_expanding(p["pe2"], x9)
    x10 = inv_block(p["inn9"], x9, x2)
    x10 = patch_expanding(p["pe1"], x10)
    x11 = inv_block(p["inn10"], x10, x)
    logits = conv2d(p["seg_head"], x11, out_dtype=jnp.float32)
    return logits.transpose(0, 3, 1, 2)              # NHWC -> NCHW once


# ----------------------------------------------------------------------------
if __name__ == "__main__":
    B, in_ch, H, W = 2, 3, 16, 16          # H, W divisible by 8 (3 patch mergings)
    inter_channels, out_channels = 8, 4

    params = init_ginn(in_ch, inter_channels, out_channels)
    x = jax.random.normal(jax.random.PRNGKey(0), (B, in_ch, H, W), dtype=jnp.float32)

    # --- standalone Pallas GEMM check (bias + relu fused, bf16 x bf16 -> f32 acc)
    ka, kw, kb = jax.random.split(jax.random.PRNGKey(0), 3)
    a_t = jax.random.normal(ka, (512, 256), jnp.float32).astype(jnp.bfloat16)
    w_t = jax.random.normal(kw, (256, 256), jnp.float32).astype(jnp.bfloat16)
    b_t = jax.random.normal(kb, (256,), jnp.float32)
    got = jax.block_until_ready(
        jax.jit(lambda a, w, b: matmul_bias_act(a, w, b, "relu", jnp.float32))(
            a_t, w_t, b_t))
    ref = jnp.maximum(
        jnp.dot(a_t, w_t, preferred_element_type=jnp.float32) + b_t[None, :], 0.0)
    assert jnp.allclose(got, ref, atol=2e-2, rtol=2e-2), \
        float(jnp.max(jnp.abs(got - ref)))

    # --- standalone Pallas affine-coupling check (lane-aligned C=128 path)
    kx, kh, kg = jax.random.split(jax.random.PRNGKey(1), 3)
    x2_t = jax.random.normal(kx, (64, 128), jnp.float32)
    h_t = jax.random.normal(kh, (64, 128), jnp.float32)
    g_t = jax.random.normal(kg, (64, 128), jnp.float32)
    got_c = jax.block_until_ready(jax.jit(affine_coupling)(x2_t, h_t, g_t))
    ref_c = x2_t * jnp.exp(0.8 * (2.0 * jax.nn.sigmoid(h_t) - 1.0)) + g_t
    assert jnp.allclose(got_c, ref_c, atol=2e-3, rtol=2e-3), \
        float(jnp.max(jnp.abs(got_c - ref_c)))

    # --- full forward under a single jit (Pallas 3x3 convs fire at 16x16 / 8x8)
    fwd = jax.jit(ginn_forward)
    logits = jax.block_until_ready(fwd(params, x))

    assert logits.shape == (B, out_channels, H, W), logits.shape
    assert bool(jnp.all(jnp.isfinite(logits)))
    print("KERNEL_OK")
</pallas_src>

<mosaic_0001>
module attributes {stable_mosaic.version = 11 : i64} {
  func.func @_gemm_kernel(%arg0: i32, %arg1: memref<256x256xbf16, #tpu.memory_space<vmem>>, %arg2: memref<256x256xbf16, #tpu.memory_space<vmem>>, %arg3: memref<1x256xf32, #tpu.memory_space<vmem>>, %arg4: memref<256x256xf32, #tpu.memory_space<vmem>>) attributes {dimension_semantics = [#tpu.dimension_semantics<parallel>], iteration_bounds = array<i64: 2>, scalar_prefetch = 0 : i64, scratch_operands = 0 : i64, tpu.core_type = #tpu.core_type<tc>, window_params = [{transform_indices = @transform_0, window_bounds = array<i64: 256, 256>}, {pipeline_mode = #tpu.pipeline_mode<synchronous>, transform_indices = @transform_1, window_bounds = array<i64: 256, 256>}, {pipeline_mode = #tpu.pipeline_mode<synchronous>, transform_indices = @transform_2, window_bounds = array<i64: 1, 256>}, {transform_indices = @transform_3, window_bounds = array<i64: 256, 256>}]} {
    %c0 = arith.constant 0 : index
    %c0_0 = arith.constant 0 : index
    %0 = vector.load %arg1[%c0, %c0_0] : memref<256x256xbf16, #tpu.memory_space<vmem>>, vector<256x256xbf16>
    %c0_1 = arith.constant 0 : index
    %c0_2 = arith.constant 0 : index
    %1 = vector.load %arg2[%c0_1, %c0_2] : memref<256x256xbf16, #tpu.memory_space<vmem>>, vector<256x256xbf16>
    %cst = arith.constant dense<0.000000e+00> : vector<256x256xf32>
    %2 = tpu.matmul %0, %1, %cst {dimension_numbers = #tpu.dot_dimension_numbers<[1], [0], [0], [1], [0, 0, 1, 1], [], []>} : vector<256x256xbf16>, vector<256x256xbf16>, vector<256x256xf32> -> vector<256x256xf32>
    %c0_3 = arith.constant 0 : index
    %c0_4 = arith.constant 0 : index
    %3 = vector.load %arg3[%c0_3, %c0_4] : memref<1x256xf32, #tpu.memory_space<vmem>>, vector<1x256xf32>
    %4 = vector.broadcast %3 : vector<1x256xf32> to vector<256x256xf32>
    %5 = arith.addf %2, %4 : vector<256x256xf32>
    %cst_5 = arith.constant 0.000000e+00 : f32
    %6 = vector.broadcast %cst_5 : f32 to vector<256x256xf32>
    %7 = arith.maximumf %5, %6 : vector<256x256xf32>
    %c0_6 = arith.constant 0 : index
    %c0_7 = arith.constant 0 : index
    %8 = vector.load %arg4[%c0_6, %c0_7] : memref<256x256xf32, #tpu.memory_space<vmem>>, vector<256x256xf32>
    tpu.vector_store %arg4[%c0_6, %c0_7], %7 {strides = array<i32>} : memref<256x256xf32, #tpu.memory_space<vmem>>, vector<256x256xf32>,
    return
  }
  func.func @transform_0(%arg0: i32) -> (i32, i32) {
    %c0_i32 = arith.constant 0 : i32
    %c0_i32_0 = arith.constant 0 : i32
    return %arg0, %c0_i32 : i32, i32
  }
  func.func @transform_1(%arg0: i32) -> (i32, i32) {
    %c0_i32 = arith.constant 0 : i32
    %c0_i32_0 = arith.constant 0 : i32
    %c0_i32_1 = arith.constant 0 : i32
    return %c0_i32, %c0_i32_0 : i32, i32
  }
  func.func @transform_2(%arg0: i32) -> (i32, i32) {
    %c0_i32 = arith.constant 0 : i32
    %c0_i32_0 = arith.constant 0 : i32
    %c0_i32_1 = arith.constant 0 : i32
    return %c0_i32, %c0_i32_0 : i32, i32
  }
  func.func @transform_3(%arg0: i32) -> (i32, i32) {
    %c0_i32 = arith.constant 0 : i32
    %c0_i32_0 = arith.constant 0 : i32
    return %arg0, %c0_i32 : i32, i32
  }
}

</mosaic_0001>

<llo_original>
// kernel: _lambda_.1
$region0: #{_lambda_.1}
  #allocation0 [shape = 'u32[]', space=smem, size = 0x4, offset = 0x4, fixed_abs, tag = 'smem constant byte address 0x4 - core index']
  #allocation1 [shape = 'u32[144,128]{1,0:T(1,128)}', space=vmem, size = 0x12000, scoped, tag = 'internal scratch']
  %s0 = inlined_call_operand.hbm [shape: bf16[512,256], index: 0, kind: input, shape index: {}]
  %s1 = inlined_call_operand.hbm [shape: bf16[256,256], index: 1, kind: input, shape index: {}]
  %s2 = inlined_call_operand.vmem [shape: f32[1,256], index: 2, kind: input, shape index: {}]
  %s3 = inlined_call_operand.hbm [shape: f32[512,256], index: 3, kind: output, shape index: {}]
  %s4 = sld [smem:[#allocation0]]
  $region53: #{_lambda_.1} parent=0
    _
  %s6 = ssub.s32 1, %s4
  %s7 = scalar_select 0, %s6, %s4
  $region1: #{_lambda_.1} parent=0
    #allocation2 [shape = 'u8[262144]{0}', space=vmem, size = 0x40000, scoped, tag = 'input window, operand 0']
    #allocation3 [shape = 's32[2]{0}', space=sflag, size = 0x8, scoped, tag = 'scoped memory for _lambda_.1']
    #allocation4 [shape = 's32[2]{0}', space=sflag, size = 0x8, scoped, tag = 'scoped memory for _lambda_.1']
    #allocation5 [shape = 'u8[131072]{0}', space=vmem, size = 0x20000, scoped, tag = 'input window, operand 1, single buffered']
    #allocation6 [shape = 's32[1]{0}', space=sflag, size = 0x4, scoped, tag = 'scoped memory for _lambda_.1']
    #allocation7 [shape = 'u8[524288]{0}', space=vmem, size = 0x80000, scoped, tag = 'output window, operand 0']
    %8 = vsyncpa [#allocation3], 0
    %s9 = scalar_lea.sflag [#allocation3], 1
    %10 = vsyncpa %s9, 0
    %11 = vsyncpa [#allocation6], 0
    %12 = vsyncpa [#allocation4], 0
    %s13 = scalar_lea.sflag [#allocation4], 1
    %14 = vsyncpa %s13, 0
    loop: start=0, step=1, limit=4
    $region2: #{_lambda_.1} parent=1 // loop_pre_header
      _
    $region3: #{_lambda_.1} parent=1 // loop_header
      %s16 = sphi 0, %s20
      %p17 = scmp.ge.s32.totalorder %s16, 4
      %s26 = sphi 0, %s28
      %s29 = sphi 0, %s26
      %s30 = sphi 0, %s29
      %s46 = sphi 0, %s30
      %s50 = sphi 0, %s50
      %s52 = sphi 0, %s50
      %s53 = sphi 0, %s52
      %s67 = sphi 0, %s53
      %s71 = sphi 0, %s71
      %s73 = sphi 0, %s71
      %s74 = sphi 0, %s73
      %s88 = sphi 0, %s74
      %s94 = sphi 0, %s96
      %s97 = sphi 0, %s94
      %s98 = sphi 0, %s97
      %s114 = sphi 0, %s98
    $region4: #{_lambda_.1} parent=1 // loop_header_branch
      %19 = sbr.rel (%p17) target = $region8
    $region5: #{_lambda_.1} parent=1 // loop_body
      %s21 = ssub.s32 %s16, 1
      %s22 = ssub.s32 %s16, 2
      %s23 = sadd.s32 %s16, 1
      %s24 = ssub.s32 %s16, %s23
      %p25 = scmp.eq.s32.totalorder %s24, 0
      %s27 = sadd.s32 %s26, 1
      %s28 = scalar_select %p25, %s26, %s27
      %p31 = pneg %p25
      %p32 = scmp.eq.s32.totalorder %s16, 1
      %p33 = por %p31, %p32
      %p34 = scmp.ne.s32.totalorder %s26, %s29
      %p35 = scmp.eq.s32.totalorder %s16, 0
      %p36 = por %p34, %p35
      %p37 = scmp.ne.s32.totalorder %s26, %s29
      %p38 = scmp.eq.s32.totalorder %s21, 1
      %p39 = por %p37, %p38
      %p40 = scmp.ne.s32.totalorder %s29, %s30
      %p41 = scmp.eq.s32.totalorder %s21, 0
      %p42 = por %p40, %p41
      %p43 = scmp.ne.s32.totalorder %s29, %s30
      %p44 = scmp.eq.s32.totalorder %s22, 1
      %p45 = por %p43, %p44
      %p47 = scmp.ne.s32.totalorder %s30, %s46
      %p48 = scmp.eq.s32.totalorder %s22, 0
      %p49 = por %p47, %p48
      %s51 = sadd.s32 %s50, 1
      %p54 = scmp.eq.s32.totalorder %s16, 1
      %p55 = scmp.ne.s32.totalorder %s50, %s52
      %p56 = scmp.eq.s32.totalorder %s16, 0
      %p57 = por %p55, %p56
      %p58 = scmp.ne.s32.totalorder %s50, %s52
      %p59 = scmp.eq.s32.totalorder %s21, 1
      %p60 = por %p58, %p59
      %p61 = scmp.ne.s32.totalorder %s52, %s53
      %p62 = scmp.eq.s32.totalorder %s21, 0
      %p63 = por %p61, %p62
      %p64 = scmp.ne.s32.totalorder %s52, %s53
      %p65 = scmp.eq.s32.totalorder %s22, 1
      %p66 = por %p64, %p65
      %p68 = scmp.ne.s32.totalorder %s53, %s67
      %p69 = scmp.eq.s32.totalorder %s22, 0
      %p70 = por %p68, %p69
      %s72 = sadd.s32 %s71, 1
      %p75 = scmp.eq.s32.totalorder %s16, 1
      %p76 = scmp.ne.s32.totalorder %s71, %s73
      %p77 = scmp.eq.s32.totalorder %s16, 0
      %p78 = por %p76, %p77
      %p79 = scmp.ne.s32.totalorder %s71, %s73
      %p80 = scmp.eq.s32.totalorder %s21, 1
      %p81 = por %p79, %p80
      %p82 = scmp.ne.s32.totalorder %s73, %s74
      %p83 = scmp.eq.s32.totalorder %s21, 0
      %p84 = por %p82, %p83
      %p85 = scmp.ne.s32.totalorder %s73, %s74
      %p86 = scmp.eq.s32.totalorder %s22, 1
      %p87 = por %p85, %p86
      %p89 = scmp.ne.s32.totalorder %s74, %s88
      %p90 = scmp.eq.s32.totalorder %s22, 0
      %p91 = por %p89, %p90
      %s92 = ssub.s32 %s16, %s23
      %p93 = scmp.eq.s32.totalorder %s92, 0
      %s95 = sadd.s32 %s94, 1
      %s96 = scalar_select %p93, %s94, %s95
      %p99 = pneg %p93
      %p100 = scmp.eq.s32.totalorder %s16, 1
      %p101 = por %p99, %p100
      %p102 = scmp.ne.s32.totalorder %s94, %s97
      %p103 = scmp.eq.s32.totalorder %s16, 0
      %p104 = por %p102, %p103
      %p105 = scmp.ne.s32.totalorder %s94, %s97
      %p106 = scmp.eq.s32.totalorder %s21, 1
      %p107 = por %p105, %p106
      %p108 = scmp.ne.s32.totalorder %s97, %s98
      %p109 = scmp.eq.s32.totalorder %s21, 0
      %p110 = por %p108, %p109
      %p111 = scmp.ne.s32.totalorder %s97, %s98
      %p112 = scmp.eq.s32.totalorder %s22, 1
      %p113 = por %p111, %p112
      %p115 = scmp.ne.s32.totalorder %s98, %s114
      %p116 = scmp.eq.s32.totalorder %s22, 0
      %p117 = por %p115, %p116
      %p118 = scmp.le.s32.totalorder 1, %s16
      %p119 = scmp.lt.s32.totalorder %s16, 3
      %p120 = pnand %p118, %p119
      %p121 = pneg %p120
      // Predicated region
      $region9: #{_lambda_.1} parent=5 // pred_check
        _
      $region10: #{_lambda_.1} parent=5 // pred_check_branch
        %123 = sbr.rel (%p120) target = $region12
      $region11: #{_lambda_.1} parent=5 // pred_region
        %s124 = ssub.s32 %s16, 1
        // Predicated region
        $region13: #{_lambda_.1} parent=11 // pred_check
          %p125 = pneg %p63
        $region14: #{_lambda_.1} parent=11 // pred_check_branch
          %127 = sbr.rel (%p125) target = $region16
        $region15: #{_lambda_.1} parent=11 // pred_region
          %s129 = ssub.s32 4096, 4096
          %130 = vsyncadd [#allocation6], %s129
          %s131 = sshll.u32 [#allocation5], 4
          %s132 = int_to_ptr.vmem [resolvable:$true] %s131
          %137 = dma.hbm_to_vmem [thread:$0]  %s1, 4096, %s132, [#allocation6], 128, 128, 8
        $region16: #{_lambda_.1} parent=11 // pred_fallthru
          _
        // Predicated region
        $region17: #{_lambda_.1} parent=11 // pred_check
          %p138 = pneg %p84
        $region18: #{_lambda_.1} parent=11 // pred_check_branch
          %140 = sbr.rel (%p138) target = $region20
        $region19: #{_lambda_.1} parent=11 // pred_region
          _
        $region20: #{_lambda_.1} parent=11 // pred_fallthru
          _
      $region12: #{_lambda_.1} parent=5 // pred_fallthru
        _
      %p141 = scmp.lt.s32.totalorder %s16, 2
      // Predicated region
      $region21: #{_lambda_.1} parent=5 // pred_check
        %p142 = pneg %p141
      $region22: #{_lambda_.1} parent=5 // pred_check_branch
        %144 = sbr.rel (%p142) target = $region24
      $region23: #{_lambda_.1} parent=5 // pred_region
        // Predicated region
        $region25: #{_lambda_.1} parent=23 // pred_check
          %p145 = pneg %p36
        $region26: #{_lambda_.1} parent=23 // pred_check_branch
          %147 = sbr.rel (%p145) target = $region28
        $region27: #{_lambda_.1} parent=23 // pred_region
          %s148 = sand.u32 %s26, 1
          %s149 = scalar_lea.sflag [#allocation3], %s148
          %s150 = sand.u32 %s26, 1
          %s151 = smul.addr %s150, 256
          %s152 = scalar_lea.vmem [#allocation2], %s151
          %s153 = smul.u32 32, %s16
          %s155 = ssub.s32 4096, 4096
          %156 = vsyncadd %s149, %s155
          %s157 = smul.addr %s153, 2
          %s158 = smul.addr %s157, 64
          %s159 = scalar_lea.hbm %s0, %s158
          %s160 = sshll.u32 %s152, 4
          %s161 = int_to_ptr.vmem [resolvable:$true] %s160
          %166 = dma.hbm_to_vmem [thread:$0]  %s159, 4096, %s161, %s149, 128, 128, 8
        $region28: #{_lambda_.1} parent=23 // pred_fallthru
          _
      $region24: #{_lambda_.1} parent=5 // pred_fallthru
        _
      %p167 = scmp.le.s32.totalorder 1, %s16
      %p168 = scmp.lt.s32.totalorder %s16, 3
      %p169 = pnand %p167, %p168
      %p170 = pneg %p169
      // Predicated region
      $region29: #{_lambda_.1} parent=5 // pred_check
        _
      $region30: #{_lambda_.1} parent=5 // pred_check_branch
        %172 = sbr.rel (%p169) target = $region32
      $region31: #{_lambda_.1} parent=5 // pred_region
        %s173 = ssub.s32 %s16, 1
        %s174 = sand.u32 %s29, 1
        %s175 = scalar_lea.sflag [#allocation3], %s174
        %s176 = sand.u32 %s29, 1
        %s177 = smul.addr %s176, 256
        %s178 = scalar_lea.vmem [#allocation2], %s177
        // Predicated region
        $region33: #{_lambda_.1} parent=31 // pred_check
          %p179 = pneg %p42
        $region34: #{_lambda_.1} parent=31 // pred_check_branch
          %181 = sbr.rel (%p179) target = $region36
        $region35: #{_lambda_.1} parent=31 // pred_region
          %182 = dma.done %s175, 4096
        $region36: #{_lambda_.1} parent=31 // pred_fallthru
          _
        // Predicated region
        $region37: #{_lambda_.1} parent=31 // pred_check
          %p183 = pneg %p63
        $region38: #{_lambda_.1} parent=31 // pred_check_branch
          %185 = sbr.rel (%p183) target = $region40
        $region39: #{_lambda_.1} parent=31 // pred_region
          %186 = dma.done [#allocation6], 4096
        $region40: #{_lambda_.1} parent=31 // pred_fallthru
          _
        %s187 = sand.u32 %s29, 1
        %s188 = scalar_lea.sflag [#allocation3], %s187
        %s189 = sand.u32 %s29, 1
        %s190 = smul.addr %s189, 256
        %s191 = scalar_lea.vmem [#allocation2], %s190
        %p192 = pneg %p42
        %p193 = pneg %p39
        %p194 = pneg %p63
        %p195 = pneg %p60
        %p196 = pneg %p84
        %p197 = pneg %p81
        %p198 = pneg %p110
        %p199 = pneg %p107
        %s200 = sand.u32 %s97, 1
        %s201 = scalar_lea.sflag [#allocation4], %s200
        %s202 = sand.u32 %s97, 1
        %s203 = smul.addr %s202, 512
        %s204 = scalar_lea.vmem [#allocation7], %s203
        %s205 = smul.u32 32, %s21
        %s206 = smul.u32 32, %s21
        %v207 = vld [vmem:[%s178] sm:$0xff]
        %v208 = vld [vmem:[%s178 + $0x8] sm:$0xff]
        %v209 = vld [vmem:[%s178 + $0x10] sm:$0xff]
        %v210 = vld [vmem:[%s178 + $0x18] sm:$0xff]
        %v211 = vld [vmem:[%s178 + $0x20] sm:$0xff]
        %v212 = vld [vmem:[%s178 + $0x28] sm:$0xff]
        %v213 = vld [vmem:[%s178 + $0x30] sm:$0xff]
        %v214 = vld [vmem:[%s178 + $0x38] sm:$0xff]
        %v215 = vld [vmem:[%s178 + $0x40] sm:$0xff]
        %v216 = vld [vmem:[%s178 + $0x48] sm:$0xff]
        %v217 = vld [vmem:[%s178 + $0x50] sm:$0xff]
        %v218 = vld [vmem:[%s178 + $0x58] sm:$0xff]
        %v219 = vld [vmem:[%s178 + $0x60] sm:$0xff]
        %v220 = vld [vmem:[%s178 + $0x68] sm:$0xff]
        %v221 = vld [vmem:[%s178 + $0x70] sm:$0xff]
        %v222 = vld [vmem:[%s178 + $0x78] sm:$0xff]
        %v223 = vld [vmem:[%s178 + $0x80] sm:$0xff]
        %v224 = vld [vmem:[%s178 + $0x88] sm:$0xff]
        %v225 = vld [vmem:[%s178 + $0x90] sm:$0xff]
        %v226 = vld [vmem:[%s178 + $0x98] sm:$0xff]
        %v227 = vld [vmem:[%s178 + $0xa0] sm:$0xff]
        %v228 = vld [vmem:[%s178 + $0xa8] sm:$0xff]
        %v229 = vld [vmem:[%s178 + $0xb0] sm:$0xff]
        %v230 = vld [vmem:[%s178 + $0xb8] sm:$0xff]
        %v231 = vld [vmem:[%s178 + $0xc0] sm:$0xff]
        %v232 = vld [vmem:[%s178 + $0xc8] sm:$0xff]
        %v233 = vld [vmem:[%s178 + $0xd0] sm:$0xff]
        %v234 = vld [vmem:[%s178 + $0xd8] sm:$0xff]
        %v235 = vld [vmem:[%s178 + $0xe0] sm:$0xff]
        %v236 = vld [vmem:[%s178 + $0xe8] sm:$0xff]
        %v237 = vld [vmem:[%s178 + $0xf0] sm:$0xff]
        %v238 = vld [vmem:[%s178 + $0xf8] sm:$0xff]
        %v239 = vld [vmem:[#allocation5] sm:$0xff]
        %v240 = vld [vmem:[#allocation5 + $0x8] sm:$0xff]
        %v241 = vld [vmem:[#allocation5 + $0x10] sm:$0xff]
        %v242 = vld [vmem:[#allocation5 + $0x18] sm:$0xff]
        %v243 = vld [vmem:[#allocation5 + $0x20] sm:$0xff]
        %v244 = vld [vmem:[#allocation5 + $0x28] sm:$0xff]
        %v245 = vld [vmem:[#allocation5 + $0x30] sm:$0xff]
        %v246 = vld [vmem:[#allocation5 + $0x38] sm:$0xff]
        %v247 = vld [vmem:[#allocation5 + $0x40] sm:$0xff]
        %v248 = vld [vmem:[#allocation5 + $0x48] sm:$0xff]
        %v249 = vld [vmem:[#allocation5 + $0x50] sm:$0xff]
        %v250 = vld [vmem:[#allocation5 + $0x58] sm:$0xff]
        %v251 = vld [vmem:[#allocation5 + $0x60] sm:$0xff]
        %v252 = vld [vmem:[#allocation5 + $0x68] sm:$0xff]
        %v253 = vld [vmem:[#allocation5 + $0x70] sm:$0xff]
        %v254 = vld [vmem:[#allocation5 + $0x78] sm:$0xff]
        %v255 = vld [vmem:[#allocation5 + $0x80] sm:$0xff]
        %v256 = vld [vmem:[#allocation5 + $0x88] sm:$0xff]
        %v257 = vld [vmem:[#allocation5 + $0x90] sm:$0xff]
        %v258 = vld [vmem:[#allocation5 + $0x98] sm:$0xff]
        %v259 = vld [vmem:[#allocation5 + $0xa0] sm:$0xff]
        %v260 = vld [vmem:[#allocation5 + $0xa8] sm:$0xff]
        %v261 = vld [vmem:[#allocation5 + $0xb0] sm:$0xff]
        %v262 = vld [vmem:[#allocation5 + $0xb8] sm:$0xff]
        %v263 = vld [vmem:[#allocation5 + $0xc0] sm:$0xff]
        %v264 = vld [vmem:[#allocation5 + $0xc8] sm:$0xff]
        %v265 = vld [vmem:[#allocation5 + $0xd0] sm:$0xff]
        %v266 = vld [vmem:[#allocation5 + $0xd8] sm:$0xff]
        %v267 = vld [vmem:[#allocation5 + $0xe0] sm:$0xff]
        %v268 = vld [vmem:[#allocation5 + $0xe8] sm:$0xff]
        %v269 = vld [vmem:[#allocation5 + $0xf0] sm:$0xff]
        %v270 = vld [vmem:[#allocation5 + $0xf8] sm:$0xff]
        %v271 = vld [vmem:[%s2] sm:$0x3]
        %v273 = vlaneseq
        %v274 = vshrl.u32 %v273, 7
        %v275 = vsub.s32 0, %v274
        %v276 = vrot.slane %v271, %v275
        %v277 = vlaneseq
        %v278 = vshrl.u32 %v277, 7
        %v279 = vsub.s32 1, %v278
        %v280 = vrot.slane %v271, %v279
        %v315 = vunpack.c.l.b16 %v207
        %v316 = vunpack.c.h.b16 %v207
        %v317 = vunpack.c.l.b16 %v208
        %v318 = vunpack.c.h.b16 %v208
        %v319 = vunpack.c.l.b16 %v209
        %v320 = vunpack.c.h.b16 %v209
        %v321 = vunpack.c.l.b16 %v210
        %v322 = vunpack.c.h.b16 %v210
        %v323 = vunpack.c.l.b16 %v211
        %v324 = vunpack.c.h.b16 %v211
        %v325 = vunpack.c.l.b16 %v212
        %v326 = vunpack.c.h.b16 %v212
        %v327 = vunpack.c.l.b16 %v213
        %v328 = vunpack.c.h.b16 %v213
        %v329 = vunpack.c.l.b16 %v214
        %v330 = vunpack.c.h.b16 %v214
        %v331 = vunpack.c.l.b16 %v215
        %v332 = vunpack.c.h.b16 %v215
        %v333 = vunpack.c.l.b16 %v216
        %v334 = vunpack.c.h.b16 %v216
        %v335 = vunpack.c.l.b16 %v217
        %v336 = vunpack.c.h.b16 %v217
        %v337 = vunpack.c.l.b16 %v218
        %v338 = vunpack.c.h.b16 %v218
        %v339 = vunpack.c.l.b16 %v219
        %v340 = vunpack.c.h.b16 %v219
        %v341 = vunpack.c.l.b16 %v220
        %v342 = vunpack.c.h.b16 %v220
        %v343 = vunpack.c.l.b16 %v221
        %v344 = vunpack.c.h.b16 %v221
        %v345 = vunpack.c.l.b16 %v222
        %v346 = vunpack.c.h.b16 %v222
        %v347 = vunpack.c.l.b16 %v223
        %v348 = vunpack.c.h.b16 %v223
        %v349 = vunpack.c.l.b16 %v224
        %v350 = vunpack.c.h.b16 %v224
        %v351 = vunpack.c.l.b16 %v225
        %v352 = vunpack.c.h.b16 %v225
        %v353 = vunpack.c.l.b16 %v226
        %v354 = vunpack.c.h.b16 %v226
        %v355 = vunpack.c.l.b16 %v227
        %v356 = vunpack.c.h.b16 %v227
        %v357 = vunpack.c.l.b16 %v228
        %v358 = vunpack.c.h.b16 %v228
        %v359 = vunpack.c.l.b16 %v229
        %v360 = vunpack.c.h.b16 %v229
        %v361 = vunpack.c.l.b16 %v230
        %v362 = vunpack.c.h.b16 %v230
        %v363 = vunpack.c.l.b16 %v231
        %v364 = vunpack.c.h.b16 %v231
        %v365 = vunpack.c.l.b16 %v232
        %v366 = vunpack.c.h.b16 %v232
        %v367 = vunpack.c.l.b16 %v233
        %v368 = vunpack.c.h.b16 %v233
        %v369 = vunpack.c.l.b16 %v234
        %v370 = vunpack.c.h.b16 %v234
        %v371 = vunpack.c.l.b16 %v235
        %v372 = vunpack.c.h.b16 %v235
        %v373 = vunpack.c.l.b16 %v236
        %v374 = vunpack.c.h.b16 %v236
        %v375 = vunpack.c.l.b16 %v237
        %v376 = vunpack.c.h.b16 %v237
        %v377 = vunpack.c.l.b16 %v238
        %v378 = vunpack.c.h.b16 %v238
        %v379 = vpack.c.b16 %v317, %v315
        %v380 = vpack.c.b16 %v318, %v316
        %v381 = vpack.c.b16 %v321, %v319
        %v382 = vpack.c.b16 %v322, %v320
        %v383 = vpack.c.b16 %v325, %v323
        %v384 = vpack.c.b16 %v326, %v324
        %v385 = vpack.c.b16 %v329, %v327
        %v386 = vpack.c.b16 %v330, %v328
        %v387 = vpack.c.b16 %v333, %v331
        %v388 = vpack.c.b16 %v334, %v332
        %v389 = vpack.c.b16 %v337, %v335
        %v390 = vpack.c.b16 %v338, %v336
        %v391 = vpack.c.b16 %v341, %v339
        %v392 = vpack.c.b16 %v342, %v340
        %v393 = vpack.c.b16 %v345, %v343
        %v394 = vpack.c.b16 %v346, %v344
        %v395 = vpack.c.b16 %v349, %v347
        %v396 = vpack.c.b16 %v350, %v348
        %v397 = vpack.c.b16 %v353, %v351
        %v398 = vpack.c.b16 %v354, %v352
        %v399 = vpack.c.b16 %v357, %v355
        %v400 = vpack.c.b16 %v358, %v356
        %v401 = vpack.c.b16 %v361, %v359
        %v402 = vpack.c.b16 %v362, %v360
        %v403 = vpack.c.b16 %v365, %v363
        %v404 = vpack.c.b16 %v366, %v364
        %v405 = vpack.c.b16 %v369, %v367
        %v406 = vpack.c.b16 %v370, %v368
        %v407 = vpack.c.b16 %v373, %v371
        %v408 = vpack.c.b16 %v374, %v372
        %v409 = vpack.c.b16 %v377, %v375
        %v410 = vpack.c.b16 %v378, %v376
        %v475 = vunpack.c.l.b16 %v239
        %v476 = vunpack.c.h.b16 %v239
        %v477 = vunpack.c.l.b16 %v240
        %v478 = vunpack.c.h.b16 %v240
        %v479 = vunpack.c.l.b16 %v241
        %v480 = vunpack.c.h.b16 %v241
        %v481 = vunpack.c.l.b16 %v242
        %v482 = vunpack.c.h.b16 %v242
        %v483 = vunpack.c.l.b16 %v243
        %v484 = vunpack.c.h.b16 %v243
        %v485 = vunpack.c.l.b16 %v244
        %v486 = vunpack.c.h.b16 %v244
        %v487 = vunpack.c.l.b16 %v245
        %v488 = vunpack.c.h.b16 %v245
        %v489 = vunpack.c.l.b16 %v246
        %v490 = vunpack.c.h.b16 %v246
        %v491 = vunpack.c.l.b16 %v247
        %v492 = vunpack.c.h.b16 %v247
        %v493 = vunpack.c.l.b16 %v248
        %v494 = vunpack.c.h.b16 %v248
        %v495 = vunpack.c.l.b16 %v249
        %v496 = vunpack.c.h.b16 %v249
        %v497 = vunpack.c.l.b16 %v250
        %v498 = vunpack.c.h.b16 %v250
        %v499 = vunpack.c.l.b16 %v251
        %v500 = vunpack.c.h.b16 %v251
        %v501 = vunpack.c.l.b16 %v252
        %v502 = vunpack.c.h.b16 %v252
        %v503 = vunpack.c.l.b16 %v253
        %v504 = vunpack.c.h.b16 %v253
        %v505 = vunpack.c.l.b16 %v254
        %v506 = vunpack.c.h.b16 %v254
        %v507 = vunpack.c.l.b16 %v255
        %v508 = vunpack.c.h.b16 %v255
        %v509 = vunpack.c.l.b16 %v256
        %v510 = vunpack.c.h.b16 %v256
        %v511 = vunpack.c.l.b16 %v257
        %v512 = vunpack.c.h.b16 %v257
        %v513 = vunpack.c.l.b16 %v258
        %v514 = vunpack.c.h.b16 %v258
        %v515 = vunpack.c.l.b16 %v259
        %v516 = vunpack.c.h.b16 %v259
        %v517 = vunpack.c.l.b16 %v260
        %v518 = vunpack.c.h.b16 %v260
        %v519 = vunpack.c.l.b16 %v261
        %v520 = vunpack.c.h.b16 %v261
        %v521 = vunpack.c.l.b16 %v262
        %v522 = vunpack.c.h.b16 %v262
        %v523 = vunpack.c.l.b16 %v263
        %v524 = vunpack.c.h.b16 %v263
        %v525 = vunpack.c.l.b16 %v264
        %v526 = vunpack.c.h.b16 %v264
        %v527 = vunpack.c.l.b16 %v265
        %v528 = vunpack.c.h.b16 %v265
        %v529 = vunpack.c.l.b16 %v266
        %v530 = vunpack.c.h.b16 %v266
        %v531 = vunpack.c.l.b16 %v267
        %v532 = vunpack.c.h.b16 %v267
        %v533 = vunpack.c.l.b16 %v268
        %v534 = vunpack.c.h.b16 %v268
        %v535 = vunpack.c.l.b16 %v269
        %v536 = vunpack.c.h.b16 %v269
        %v537 = vunpack.c.l.b16 %v270
        %v538 = vunpack.c.h.b16 %v270
        %v539 = vpack.c.b16 %v477, %v475
        %v540 = vpack.c.b16 %v478, %v476
        %v541 = vpack.c.b16 %v481, %v479
        %v542 = vpack.c.b16 %v482, %v480
        %v543 = vpack.c.b16 %v485, %v483
        %v544 = vpack.c.b16 %v486, %v484
        %v545 = vpack.c.b16 %v489, %v487
        %v546 = vpack.c.b16 %v490, %v488
        %v547 = vpack.c.b16 %v493, %v491
        %v548 = vpack.c.b16 %v494, %v492
        %v549 = vpack.c.b16 %v497, %v495
        %v550 = vpack.c.b16 %v498, %v496
        %v551 = vpack.c.b16 %v501, %v499
        %v552 = vpack.c.b16 %v502, %v500
        %v553 = vpack.c.b16 %v505, %v503
        %v554 = vpack.c.b16 %v506, %v504
        %v555 = vpack.c.b16 %v509, %v507
        %v556 = vpack.c.b16 %v510, %v508
        %v557 = vpack.c.b16 %v513, %v511
        %v558 = vpack.c.b16 %v514, %v512
        %v559 = vpack.c.b16 %v517, %v515
        %v560 = vpack.c.b16 %v518, %v516
        %v561 = vpack.c.b16 %v521, %v519
        %v562 = vpack.c.b16 %v522, %v520
        %v563 = vpack.c.b16 %v525, %v523
        %v564 = vpack.c.b16 %v526, %v524
        %v565 = vpack.c.b16 %v529, %v527
        %v566 = vpack.c.b16 %v530, %v528
        %v567 = vpack.c.b16 %v533, %v531
        %v568 = vpack.c.b16 %v534, %v532
        %v569 = vpack.c.b16 %v537, %v535
        %v570 = vpack.c.b16 %v538, %v536
        %603 = vmatprep.subr.bf16.mxu0 %v554
        %604 = vmatpush1.bf16.msra.mxu0 %v553
        %605 = vmatprep.subr.bf16.mxu0 %v552
        %606 = vmatpush1.bf16.msra.mxu0 %v551
        %607 = vmatprep.subr.bf16.mxu0 %v550
        %608 = vmatpush1.bf16.msra.mxu0 %v549
        %609 = vmatprep.subr.bf16.mxu0 %v548
        %610 = vmatpush1.bf16.msra.mxu0 %v547
        %611 = vmatprep.subr.bf16.mxu0 %v546
        %612 = vmatpush1.bf16.msra.mxu0 %v545
        %613 = vmatprep.subr.bf16.mxu0 %v544
        %614 = vmatpush1.bf16.msra.mxu0 %v543
        %615 = vmatprep.subr.bf16.mxu0 %v542
        %616 = vmatpush1.bf16.msra.mxu0 %v541
        %617 = vmatprep.subr.bf16.mxu0 %v540
        %618 = vmatpush1.bf16.msra.mxu0 %v539
        %619 = vmatprep.subr.bf16.mxu0 %v570
        %620 = vmatpush2.bf16.msra.mxu0 %v569
        %621 = vmatprep.subr.bf16.mxu0 %v568
        %622 = vmatpush2.bf16.msra.mxu0 %v567
        %623 = vmatprep.subr.bf16.mxu0 %v566
        %624 = vmatpush2.bf16.msra.mxu0 %v565
        %625 = vmatprep.subr.bf16.mxu0 %v564
        %626 = vmatpush2.bf16.msra.mxu0 %v563
        %627 = vmatprep.subr.bf16.mxu0 %v562
        %628 = vmatpush2.bf16.msra.mxu0 %v561
        %629 = vmatprep.subr.bf16.mxu0 %v560
        %630 = vmatpush2.bf16.msra.mxu0 %v559
        %631 = vmatprep.subr.bf16.mxu0 %v558
        %632 = vmatpush2.bf16.msra.mxu0 %v557
        %633 = vmatprep.subr.bf16.mxu0 %v556
        %634 = vmatpush2.bf16.msra.mxu0 %v555
        %635 = vmatprep.mubr.bf16.mxu0 %v380
        %636 = vmatmul.mubr.bf16.gmra.mxu0 %v379
        %v637 = vpop.f32.mrf.mxu0
        %v638 = vadd.f32 %v276, %v637
        %v639 = vpop.f32.mrf.mxu0
        %v640 = vadd.f32 %v280, %v639
        %v641 = vpop.f32.mrf.mxu0
        %v642 = vadd.f32 %v276, %v641
        %v643 = vpop.f32.mrf.mxu0
        %v644 = vadd.f32 %v280, %v643
        %645 = vmatprep.mubr.bf16.mxu0 %v382
        %646 = vmatmul.mubr.bf16.gmra.mxu0 %v381
        %v647 = vpop.f32.mrf.mxu0
        %v648 = vadd.f32 %v276, %v647
        %v649 = vpop.f32.mrf.mxu0
        %v650 = vadd.f32 %v280, %v649
        %v651 = vpop.f32.mrf.mxu0
        %v652 = vadd.f32 %v276, %v651
        %v653 = vpop.f32.mrf.mxu0
        %v654 = vadd.f32 %v280, %v653
        %655 = vmatprep.mubr.bf16.mxu0 %v384
        %656 = vmatmul.mubr.bf16.gmra.mxu0 %v383
        %v657 = vpop.f32.mrf.mxu0
        %v658 = vadd.f32 %v276, %v657
        %v659 = vpop.f32.mrf.mxu0
        %v660 = vadd.f32 %v280, %v659
        %v661 = vpop.f32.mrf.mxu0
        %v662 = vadd.f32 %v276, %v661
        %v663 = vpop.f32.mrf.mxu0
        %v664 = vadd.f32 %v280, %v663
        %665 = vmatprep.mubr.bf16.mxu0 %v386
        %666 = vmatmul.mubr.bf16.gmra.mxu0 %v385
        %v667 = vpop.f32.mrf.mxu0
        %v668 = vadd.f32 %v276, %v667
        %v669 = vpop.f32.mrf.mxu0
        %v670 = vadd.f32 %v280, %v669
        %v671 = vpop.f32.mrf.mxu0
        %v672 = vadd.f32 %v276, %v671
        %v673 = vpop.f32.mrf.mxu0
        %v674 = vadd.f32 %v280, %v673
        %675 = vmatprep.mubr.bf16.mxu0 %v388
        %676 = vmatmul.mubr.bf16.gmra.mxu0 %v387
        %v677 = vpop.f32.mrf.mxu0
        %v678 = vadd.f32 %v276, %v677
        %v679 = vpop.f32.mrf.mxu0
        %v680 = vadd.f32 %v280, %v679
        %v681 = vpop.f32.mrf.mxu0
        %v682 = vadd.f32 %v276, %v681
        %v683 = vpop.f32.mrf.mxu0
        %v684 = vadd.f32 %v280, %v683
        %685 = vmatprep.mubr.bf16.mxu0 %v390
        %686 = vmatmul.mubr.bf16.gmra.mxu0 %v389
        %v687 = vpop.f32.mrf.mxu0
        %v688 = vadd.f32 %v276, %v687
        %v689 = vpop.f32.mrf.mxu0
        %v690 = vadd.f32 %v280, %v689
        %v691 = vpop.f32.mrf.mxu0
        %v692 = vadd.f32 %v276, %v691
        %v693 = vpop.f32.mrf.mxu0
        %v694 = vadd.f32 %v280, %v693
        %695 = vmatprep.mubr.bf16.mxu0 %v392
        %696 = vmatmul.mubr.bf16.gmra.mxu0 %v391
        %v697 = vpop.f32.mrf.mxu0
        %v698 = vadd.f32 %v276, %v697
        %v699 = vpop.f32.mrf.mxu0
        %v700 = vadd.f32 %v280, %v699
        %v701 = vpop.f32.mrf.mxu0
        %v702 = vadd.f32 %v276, %v701
        %v703 = vpop.f32.mrf.mxu0
        %v704 = vadd.f32 %v280, %v703
        %705 = vmatprep.mubr.bf16.mxu0 %v394
        %706 = vmatmul.mubr.bf16.gmra.mxu0 %v393
        %v707 = vpop.f32.mrf.mxu0
        %v708 = vadd.f32 %v276, %v707
        %v709 = vpop.f32.mrf.mxu0
        %v710 = vadd.f32 %v280, %v709
        %v711 = vpop.f32.mrf.mxu0
        %v712 = vadd.f32 %v276, %v711
        %v713 = vpop.f32.mrf.mxu0
        %v714 = vadd.f32 %v280, %v713
        %715 = vmatprep.mubr.bf16.mxu0 %v396
        %716 = vmatmul.mubr.bf16.gmra.mxu0 %v395
        %v717 = vpop.f32.mrf.mxu0
        %v718 = vadd.f32 %v276, %v717
        %v719 = vpop.f32.mrf.mxu0
        %v720 = vadd.f32 %v280, %v719
        %v721 = vpop.f32.mrf.mxu0
        %v722 = vadd.f32 %v276, %v721
        %v723 = vpop.f32.mrf.mxu0
        %v724 = vadd.f32 %v280, %v723
        %725 = vmatprep.mubr.bf16.mxu0 %v398
        %726 = vmatmul.mubr.bf16.gmra.mxu0 %v397
        %v727 = vpop.f32.mrf.mxu0
        %v728 = vadd.f32 %v276, %v727
        %v729 = vpop.f32.mrf.mxu0
        %v730 = vadd.f32 %v280, %v729
        %v731 = vpop.f32.mrf.mxu0
        %v732 = vadd.f32 %v276, %v731
        %v733 = vpop.f32.mrf.mxu0
        %v734 = vadd.f32 %v280, %v733
        %735 = vmatprep.mubr.bf16.mxu0 %v400
        %736 = vmatmul.mubr.bf16.gmra.mxu0 %v399
        %v737 = vpop.f32.mrf.mxu0
        %v738 = vadd.f32 %v276, %v737
        %v739 = vpop.f32.mrf.mxu0
        %v740 = vadd.f32 %v280, %v739
        %v741 = vpop.f32.mrf.mxu0
        %v742 = vadd.f32 %v276, %v741
        %v743 = vpop.f32.mrf.mxu0
        %v744 = vadd.f32 %v280, %v743
        %745 = vmatprep.mubr.bf16.mxu0 %v402
        %746 = vmatmul.mubr.bf16.gmra.mxu0 %v401
        %v747 = vpop.f32.mrf.mxu0
        %v748 = vadd.f32 %v276, %v747
        %v749 = vpop.f32.mrf.mxu0
        %v750 = vadd.f32 %v280, %v749
        %v751 = vpop.f32.mrf.mxu0
        %v752 = vadd.f32 %v276, %v751
        %v753 = vpop.f32.mrf.mxu0
        %v754 = vadd.f32 %v280, %v753
        %755 = vmatprep.mubr.bf16.mxu0 %v404
        %756 = vmatmul.mubr.bf16.gmra.mxu0 %v403
        %v757 = vpop.f32.mrf.mxu0
        %v758 = vadd.f32 %v276, %v757
        %v759 = vpop.f32.mrf.mxu0
        %v760 = vadd.f32 %v280, %v759
        %v761 = vpop.f32.mrf.mxu0
        %v762 = vadd.f32 %v276, %v761
        %v763 = vpop.f32.mrf.mxu0
        %v764 = vadd.f32 %v280, %v763
        %765 = vmatprep.mubr.bf16.mxu0 %v406
        %766 = vmatmul.mubr.bf16.gmra.mxu0 %v405
        %v767 = vpop.f32.mrf.mxu0
        %v768 = vadd.f32 %v276, %v767
        %v769 = vpop.f32.mrf.mxu0
        %v770 = vadd.f32 %v280, %v769
        %v771 = vpop.f32.mrf.mxu0
        %v772 = vadd.f32 %v276, %v771
        %v773 = vpop.f32.mrf.mxu0
        %v774 = vadd.f32 %v280, %v773
        %775 = vmatprep.mubr.bf16.mxu0 %v408
        %776 = vmatmul.mubr.bf16.gmra.mxu0 %v407
        %v777 = vpop.f32.mrf.mxu0
        %v778 = vadd.f32 %v276, %v777
        %v779 = vpop.f32.mrf.mxu0
        %v780 = vadd.f32 %v280, %v779
        %v781 = vpop.f32.mrf.mxu0
        %v782 = vadd.f32 %v276, %v781
        %v783 = vpop.f32.mrf.mxu0
        %v784 = vadd.f32 %v280, %v783
        %785 = vmatprep.mubr.bf16.mxu0 %v410
        %786 = vmatmul.mubr.bf16.gmra.mxu0 %v409
        %v787 = vpop.f32.mrf.mxu0
        %v788 = vadd.f32 %v276, %v787
        %v789 = vpop.f32.mrf.mxu0
        %v790 = vadd.f32 %v280, %v789
        %v791 = vpop.f32.mrf.mxu0
        %v792 = vadd.f32 %v276, %v791
        %v793 = vpop.f32.mrf.mxu0
        %v794 = vadd.f32 %v280, %v793
        %795 = vdwg.mxu0
        %v796 = vmax.f32 %v638, 0.0
        %v797 = vmax.f32 %v640, 0.0
        %v798 = vmax.f32 %v642, 0.0
        %v799 = vmax.f32 %v644, 0.0
        %v800 = vmax.f32 %v648, 0.0
        %v801 = vmax.f32 %v650, 0.0
        %v802 = vmax.f32 %v652, 0.0
        %v803 = vmax.f32 %v654, 0.0
        %v804 = vmax.f32 %v658, 0.0
        %v805 = vmax.f32 %v660, 0.0
        %v806 = vmax.f32 %v662, 0.0
        %v807 = vmax.f32 %v664, 0.0
        %v808 = vmax.f32 %v668, 0.0
        %v809 = vmax.f32 %v670, 0.0
        %v810 = vmax.f32 %v672, 0.0
        %v811 = vmax.f32 %v674, 0.0
        %v812 = vmax.f32 %v678, 0.0
        %v813 = vmax.f32 %v680, 0.0
        %v814 = vmax.f32 %v682, 0.0
        %v815 = vmax.f32 %v684, 0.0
        %v816 = vmax.f32 %v688, 0.0
        %v817 = vmax.f32 %v690, 0.0
        %v818 = vmax.f32 %v692, 0.0
        %v819 = vmax.f32 %v694, 0.0
        %v820 = vmax.f32 %v698, 0.0
        %v821 = vmax.f32 %v700, 0.0
        %v822 = vmax.f32 %v702, 0.0
        %v823 = vmax.f32 %v704, 0.0
        %v824 = vmax.f32 %v708, 0.0
        %v825 = vmax.f32 %v710, 0.0
        %v826 = vmax.f32 %v712, 0.0
        %v827 = vmax.f32 %v714, 0.0
        %v828 = vmax.f32 %v718, 0.0
        %v829 = vmax.f32 %v720, 0.0
        %v830 = vmax.f32 %v722, 0.0
        %v831 = vmax.f32 %v724, 0.0
        %v832 = vmax.f32 %v728, 0.0
        %v833 = vmax.f32 %v730, 0.0
        %v834 = vmax.f32 %v732, 0.0
        %v835 = vmax.f32 %v734, 0.0
        %v836 = vmax.f32 %v738, 0.0
        %v837 = vmax.f32 %v740, 0.0
        %v838 = vmax.f32 %v742, 0.0
        %v839 = vmax.f32 %v744, 0.0
        %v840 = vmax.f32 %v748, 0.0
        %v841 = vmax.f32 %v750, 0.0
        %v842 = vmax.f32 %v752, 0.0
        %v843 = vmax.f32 %v754, 0.0
        %v844 = vmax.f32 %v758, 0.0
        %v845 = vmax.f32 %v760, 0.0
        %v846 = vmax.f32 %v762, 0.0
        %v847 = vmax.f32 %v764, 0.0
        %v848 = vmax.f32 %v768, 0.0
        %v849 = vmax.f32 %v770, 0.0
        %v850 = vmax.f32 %v772, 0.0
        %v851 = vmax.f32 %v774, 0.0
        %v852 = vmax.f32 %v778, 0.0
        %v853 = vmax.f32 %v780, 0.0
        %v854 = vmax.f32 %v782, 0.0
        %v855 = vmax.f32 %v784, 0.0
        %v856 = vmax.f32 %v788, 0.0
        %v857 = vmax.f32 %v790, 0.0
        %v858 = vmax.f32 %v792, 0.0
        %v859 = vmax.f32 %v794, 0.0
        %860 = vst [vmem:[%s204] sm:$0xff] %v796
        %861 = vst [vmem:[%s204 + $0x8] sm:$0xff] %v797
        %862 = vst [vmem:[%s204 + $0x10] sm:$0xff] %v798
        %863 = vst [vmem:[%s204 + $0x18] sm:$0xff] %v799
        %864 = vst [vmem:[%s204 + $0x20] sm:$0xff] %v800
        %865 = vst [vmem:[%s204 + $0x28] sm:$0xff] %v801
        %866 = vst [vmem:[%s204 + $0x30] sm:$0xff] %v802
        %867 = vst [vmem:[%s204 + $0x38] sm:$0xff] %v803
        %868 = vst [vmem:[%s204 + $0x40] sm:$0xff] %v804
        %869 = vst [vmem:[%s204 + $0x48] sm:$0xff] %v805
        %870 = vst [vmem:[%s204 + $0x50] sm:$0xff] %v806
        %871 = vst [vmem:[%s204 + $0x58] sm:$0xff] %v807
        %872 = vst [vmem:[%s204 + $0x60] sm:$0xff] %v808
        %873 = vst [vmem:[%s204 + $0x68] sm:$0xff] %v809
        %874 = vst [vmem:[%s204 + $0x70] sm:$0xff] %v810
        %875 = vst [vmem:[%s204 + $0x78] sm:$0xff] %v811
        %876 = vst [vmem:[%s204 + $0x80] sm:$0xff] %v812
        %877 = vst [vmem:[%s204 + $0x88] sm:$0xff] %v813
        %878 = vst [vmem:[%s204 + $0x90] sm:$0xff] %v814
        %879 = vst [vmem:[%s204 + $0x98] sm:$0xff] %v815
        %880 = vst [vmem:[%s204 + $0xa0] sm:$0xff] %v816
        %881 = vst [vmem:[%s204 + $0xa8] sm:$0xff] %v817
        %882 = vst [vmem:[%s204 + $0xb0] sm:$0xff] %v818
        %883 = vst [vmem:[%s204 + $0xb8] sm:$0xff] %v819
        %884 = vst [vmem:[%s204 + $0xc0] sm:$0xff] %v820
        %885 = vst [vmem:[%s204 + $0xc8] sm:$0xff] %v821
        %886 = vst [vmem:[%s204 + $0xd0] sm:$0xff] %v822
        %887 = vst [vmem:[%s204 + $0xd8] sm:$0xff] %v823
        %888 = vst [vmem:[%s204 + $0xe0] sm:$0xff] %v824
        %889 = vst [vmem:[%s204 + $0xe8] sm:$0xff] %v825
        %890 = vst [vmem:[%s204 + $0xf0] sm:$0xff] %v826
        %891 = vst [vmem:[%s204 + $0xf8] sm:$0xff] %v827
        %892 = vst [vmem:[%s204 + $0x100] sm:$0xff] %v828
        %893 = vst [vmem:[%s204 + $0x108] sm:$0xff] %v829
        %894 = vst [vmem:[%s204 + $0x110] sm:$0xff] %v830
        %895 = vst [vmem:[%s204 + $0x118] sm:$0xff] %v831
        %896 = vst [vmem:[%s204 + $0x120] sm:$0xff] %v832
        %897 = vst [vmem:[%s204 + $0x128] sm:$0xff] %v833
        %898 = vst [vmem:[%s204 + $0x130] sm:$0xff] %v834
        %899 = vst [vmem:[%s204 + $0x138] sm:$0xff] %v835
        %900 = vst [vmem:[%s204 + $0x140] sm:$0xff] %v836
        %901 = vst [vmem:[%s204 + $0x148] sm:$0xff] %v837
        %902 = vst [vmem:[%s204 + $0x150] sm:$0xff] %v838
        %903 = vst [vmem:[%s204 + $0x158] sm:$0xff] %v839
        %904 = vst [vmem:[%s204 + $0x160] sm:$0xff] %v840
        %905 = vst [vmem:[%s204 + $0x168] sm:$0xff] %v841
        %906 = vst [vmem:[%s204 + $0x170] sm:$0xff] %v842
        %907 = vst [vmem:[%s204 + $0x178] sm:$0xff] %v843
        %908 = vst [vmem:[%s204 + $0x180] sm:$0xff] %v844
        %909 = vst [vmem:[%s204 + $0x188] sm:$0xff] %v845
        %910 = vst [vmem:[%s204 + $0x190] sm:$0xff] %v846
        %911 = vst [vmem:[%s204 + $0x198] sm:$0xff] %v847
        %912 = vst [vmem:[%s204 + $0x1a0] sm:$0xff] %v848
        %913 = vst [vmem:[%s204 + $0x1a8] sm:$0xff] %v849
        %914 = vst [vmem:[%s204 + $0x1b0] sm:$0xff] %v850
        %915 = vst [vmem:[%s204 + $0x1b8] sm:$0xff] %v851
        %916 = vst [vmem:[%s204 + $0x1c0] sm:$0xff] %v852
        %917 = vst [vmem:[%s204 + $0x1c8] sm:$0xff] %v853
        %918 = vst [vmem:[%s204 + $0x1d0] sm:$0xff] %v854
        %919 = vst [vmem:[%s204 + $0x1d8] sm:$0xff] %v855
        %920 = vst [vmem:[%s204 + $0x1e0] sm:$0xff] %v856
        %921 = vst [vmem:[%s204 + $0x1e8] sm:$0xff] %v857
        %922 = vst [vmem:[%s204 + $0x1f0] sm:$0xff] %v858
        %923 = vst [vmem:[%s204 + $0x1f8] sm:$0xff] %v859
        %s924 = sand.u32 %s97, 1
        %s925 = scalar_lea.sflag [#allocation4], %s924
        %s926 = sand.u32 %s97, 1
        %s927 = smul.addr %s926, 512
        %s928 = scalar_lea.vmem [#allocation7], %s927
        // Predicated region
        $region41: #{_lambda_.1} parent=31 // pred_check
          %p929 = pneg %p107
        $region42: #{_lambda_.1} parent=31 // pred_check_branch
          %931 = sbr.rel (%p929) target = $region44
        $region43: #{_lambda_.1} parent=31 // pred_region
          %s932 = smul.u32 32, %s21
          %s934 = ssub.s32 8192, 8192
          %935 = vsyncadd %s925, %s934
          %s936 = smul.addr %s932, 2
          %s937 = smul.addr %s936, 128
          %s938 = scalar_lea.hbm %s3, %s937
          %s939 = sshll.u32 %s928, 4
          %s940 = int_to_ptr.vmem [resolvable:$true] %s939
          %945 = dma.vmem_to_hbm [thread:$0]  %s940, 8192, %s938, %s925, 256, 256, 16
        $region44: #{_lambda_.1} parent=31 // pred_fallthru
          _
      $region32: #{_lambda_.1} parent=5 // pred_fallthru
        _
      %p946 = scmp.le.s32.totalorder 2, %s16
      // Predicated region
      $region45: #{_lambda_.1} parent=5 // pred_check
        %p947 = pneg %p946
      $region46: #{_lambda_.1} parent=5 // pred_check_branch
        %949 = sbr.rel (%p947) target = $region48
      $region47: #{_lambda_.1} parent=5 // pred_region
        %s950 = ssub.s32 %s16, 2
        // Predicated region
        $region49: #{_lambda_.1} parent=47 // pred_check
          %p951 = pneg %p113
        $region50: #{_lambda_.1} parent=47 // pred_check_branch
          %953 = sbr.rel (%p951) target = $region52
        $region51: #{_lambda_.1} parent=47 // pred_region
          %s954 = sand.u32 %s98, 1
          %s955 = scalar_lea.sflag [#allocation4], %s954
          %s956 = sand.u32 %s98, 1
          %s957 = smul.addr %s956, 512
          %s958 = scalar_lea.vmem [#allocation7], %s957
          %959 = dma.done %s955, 8192
        $region52: #{_lambda_.1} parent=47 // pred_fallthru
          _
      $region48: #{_lambda_.1} parent=5 // pred_fallthru
        _
    $region6: #{_lambda_.1} parent=1 // loop_footer
      %s20 = sadd.s32 1, %s16
    $region7: #{_lambda_.1} parent=1 // loop_footer_branch
      %15 = sbr.rel target = $region3
    $region8: #{_lambda_.1} parent=1 // loop_exit
      _
    %960 = vsyncpa [#allocation3], 1
    %s961 = scalar_lea.sflag [#allocation3], 1
    %962 = vsyncpa %s961, 1
    %963 = vsyncpa [#allocation6], 1
    %964 = vsyncpa [#allocation4], 1
    %s965 = scalar_lea.sflag [#allocation4], 1
    %966 = vsyncpa %s965, 1

</llo_original>
